<compile_context>
chip_gen: v7x
topology: tpu7x:2x2x1
jax: 0.10.0
libtpu: 0.0.40
codegen_flags: <defaults>
</compile_context>

<pallas_src>
import jax
import jax.numpy as jnp
from jax import lax
from jax.experimental import pallas as pl
from jax.experimental.pallas import tpu as pltpu


def _mlp_kernel(x_ref, w1_ref, b1_ref, w2_ref, b2_ref, w3_ref, b3_ref, o_ref):
    x = x_ref[...]                                                   # (TB, 3) f32

    # Layer 1: Linear(3 -> 32) + ReLU  (Dropout(0.3) == identity in eval).
    # Contract over x's last dim so the result is feature-major (batch on the
    # 128-lane axis) without any wrapper-side transpose; K=3 is tiny so f32 here
    # is essentially free and keeps the transposed-operand path in f32.
    h1 = lax.dot_general(w1_ref[...], x, (((1,), (1,)), ((), ())),
                         preferred_element_type=jnp.float32) + b1_ref[...]  # (32, TB)
    h1 = jnp.maximum(h1, 0.0)

    # Layer 2: Linear(32 -> 16) + ReLU  (Dropout(0.2) == identity in eval).
    # Native bf16 MXU inputs, f32 accumulation (w2_ref is pre-cast to bf16).
    h2 = jnp.dot(w2_ref[...], h1.astype(jnp.bfloat16),
                 preferred_element_type=jnp.float32) + b2_ref[...]          # (16, TB)
    h2 = jnp.maximum(h2, 0.0)

    # Layer 3: Linear(16 -> 1).  An N=1 MXU matmul wastes the systolic array, so
    # do a VPU multiply + XLU sublane reduce; b3 is a scalar read from SMEM.
    out = jnp.sum(w3_ref[...] * h2, axis=0, keepdims=True) + b3_ref[0, 0]   # (1, TB)
    o_ref[...] = out.astype(o_ref.dtype)


def _pick_tile(batch, *, align=512, max_tile=16384, min_steps=2):
    """Batch-tile size: lane-aligned (multiple of 512) when the batch is split,
    >= min_steps (even) grid steps for v7x's 2 TCs, capped at 16384 so
    intermediates (~300 B/row) stay well inside v5e's 16 MiB scoped VMEM."""
    if batch <= min_steps * align:
        return batch                              # single block == full array
    n_steps = max(min_steps, 2 * pl.cdiv(pl.cdiv(batch, max_tile), 2))
    tb = pl.cdiv(pl.cdiv(batch, n_steps), align) * align
    return min(tb, max_tile)


def ensemble_model_forward(x, params):
    """x: (B, 3) float32.  Returns (B, 1) float32 (eval-mode forward)."""
    w1, b1, w2, b2, w3, b3 = params
    B, F = x.shape

    tb = _pick_tile(B)
    grid = (pl.cdiv(B, tb),)                      # ragged last tile masked by Pallas

    # Grid-invariant operands: constant index_maps keep them VMEM-resident;
    # w2 is cast to bf16 once here (not per grid step).
    w2b = w2.astype(jnp.bfloat16)
    b3s = b3.reshape(1, 1).astype(jnp.float32)
    const = lambda a: pl.BlockSpec(a.shape, lambda i: (0,) * a.ndim)

    flops = 2 * B * (F * 32 + 32 * 16 + 16)
    bytes_accessed = (4 * B * (F + 1)
                      + sum(int(p.size) * p.dtype.itemsize for p in (w1, b1, w2b, b2, w3))
                      + 4)

    out = pl.pallas_call(
        _mlp_kernel,
        out_shape=jax.ShapeDtypeStruct((1, B), jnp.float32),
        grid=grid,
        in_specs=[
            pl.BlockSpec((tb, F), lambda i: (i, 0)),              # x streamed as-is from HBM
            const(w1), const(b1), const(w2b), const(b2), const(w3),
            pl.BlockSpec(memory_space=pltpu.MemorySpace.SMEM),    # b3 scalar
        ],
        out_specs=pl.BlockSpec((1, tb), lambda i: (0, i)),        # lane-dense output
        compiler_params=pltpu.CompilerParams(
            dimension_semantics=("parallel",)),
        cost_estimate=pl.CostEstimate(
            flops=flops, transcendentals=0, bytes_accessed=bytes_accessed),
    )(x, w1, b1, w2b, b2, w3, b3s)

    return out[0].reshape(B, 1)


def init_params(key, input_size=3):
    """Deterministic init mimicking PyTorch nn.Linear (uniform ±1/sqrt(fan_in)).

    Weights are kept in PyTorch (out_features, in_features) layout for layers 1/2
    (the feature-major kernel computes W @ x^T directly).  The last layer's weight
    is stored as a (16, 1) column and biases as (out_features, 1) columns so they
    broadcast against (features, TB) tiles inside the kernel.
    """
    shapes = [(32, input_size), (16, 32), (1, 16)]
    params = []
    for i, (fan_out, fan_in) in enumerate(shapes):
        kw, kb = jax.random.split(jax.random.fold_in(key, i))
        bound = 1.0 / jnp.sqrt(float(fan_in))
        w = jax.random.uniform(kw, (fan_out, fan_in), jnp.float32, -bound, bound)
        b = jax.random.uniform(kb, (fan_out, 1), jnp.float32, -bound, bound)
        params.extend([w, b])
    w1, b1, w2, b2, w3, b3 = params
    return (w1, b1, w2, b2, w3.T, b3)            # w3 stored as (16, 1)


def reference_forward(x, params):
    w1, b1, w2, b2, w3, b3 = params
    h1 = jnp.maximum(x @ w1.T + b1.T, 0.0)
    h2 = jnp.maximum(h1 @ w2.T + b2.T, 0.0)
    return h2 @ w3 + b3.T


if __name__ == "__main__":
    key = jax.random.PRNGKey(0)
    k_x, k_p = jax.random.split(key)

    input_size = 3
    params = init_params(k_p, input_size)

    # Small primary test (single full-array block).
    batch = 8
    x = jax.random.normal(k_x, (batch, input_size), jnp.float32)
    out = jax.block_until_ready(ensemble_model_forward(x, params))
    ref = reference_forward(x, params)
    assert out.shape == (batch, 1), out.shape
    # bf16 layer-2 matmul (f32 accumulate) -> loosened tolerance vs f32 reference.
    assert jnp.allclose(out, ref, atol=2e-2, rtol=2e-2), "mismatch vs reference (small)"

    # Exercise the multi-step grid + ragged boundary tile (no wrapper pad/transpose).
    batch2 = 1030
    x2 = jax.random.normal(jax.random.fold_in(k_x, 1), (batch2, input_size), jnp.float32)
    out2 = jax.block_until_ready(ensemble_model_forward(x2, params))
    ref2 = reference_forward(x2, params)
    assert out2.shape == (batch2, 1), out2.shape
    assert jnp.allclose(out2, ref2, atol=2e-2, rtol=2e-2), "mismatch vs reference (ragged)"

    print("KERNEL_OK")
</pallas_src>

<mosaic_0001>
module attributes {stable_mosaic.version = 11 : i64} {
  func.func @_mlp_kernel(%arg0: i32, %arg1: memref<8x3xf32, #tpu.memory_space<vmem>>, %arg2: memref<32x3xf32, #tpu.memory_space<vmem>>, %arg3: memref<32x1xf32, #tpu.memory_space<vmem>>, %arg4: memref<16x32xbf16, #tpu.memory_space<vmem>>, %arg5: memref<16x1xf32, #tpu.memory_space<vmem>>, %arg6: memref<16x1xf32, #tpu.memory_space<vmem>>, %arg7: memref<1x1xf32, #tpu.memory_space<smem>>, %arg8: memref<1x8xf32, #tpu.memory_space<vmem>>) attributes {dimension_semantics = [#tpu.dimension_semantics<parallel>], iteration_bounds = array<i64: 1>, scalar_prefetch = 0 : i64, scratch_operands = 0 : i64, tpu.core_type = #tpu.core_type<tc>, window_params = [{transform_indices = @transform_0, window_bounds = array<i64: 8, 3>}, {pipeline_mode = #tpu.pipeline_mode<synchronous>, transform_indices = @transform_1, window_bounds = array<i64: 32, 3>}, {pipeline_mode = #tpu.pipeline_mode<synchronous>, transform_indices = @transform_2, window_bounds = array<i64: 32, 1>}, {pipeline_mode = #tpu.pipeline_mode<synchronous>, transform_indices = @transform_3, window_bounds = array<i64: 16, 32>}, {pipeline_mode = #tpu.pipeline_mode<synchronous>, transform_indices = @transform_4, window_bounds = array<i64: 16, 1>}, {pipeline_mode = #tpu.pipeline_mode<synchronous>, transform_indices = @transform_5, window_bounds = array<i64: 16, 1>}, {transform_indices = @transform_6, window_bounds = array<i64: 1, 1>}, {transform_indices = @transform_7, window_bounds = array<i64: 1, 8>}]} {
    %c0 = arith.constant 0 : index
    %c0_0 = arith.constant 0 : index
    %0 = vector.load %arg1[%c0, %c0_0] : memref<8x3xf32, #tpu.memory_space<vmem>>, vector<8x3xf32>
    %c0_1 = arith.constant 0 : index
    %c0_2 = arith.constant 0 : index
    %1 = vector.load %arg2[%c0_1, %c0_2] : memref<32x3xf32, #tpu.memory_space<vmem>>, vector<32x3xf32>
    %cst = arith.constant dense<0.000000e+00> : vector<32x8xf32>
    %2 = tpu.matmul %1, %0, %cst {dimension_numbers = #tpu.dot_dimension_numbers<[1], [1], [0], [0], [0, 0, 1, 0], [], []>} : vector<32x3xf32>, vector<8x3xf32>, vector<32x8xf32> -> vector<32x8xf32>
    %c0_3 = arith.constant 0 : index
    %c0_4 = arith.constant 0 : index
    %3 = vector.load %arg3[%c0_3, %c0_4] : memref<32x1xf32, #tpu.memory_space<vmem>>, vector<32x1xf32>
    %4 = vector.broadcast %3 : vector<32x1xf32> to vector<32x8xf32>
    %5 = arith.addf %2, %4 : vector<32x8xf32>
    %cst_5 = arith.constant 0.000000e+00 : f32
    %6 = vector.broadcast %cst_5 : f32 to vector<32x8xf32>
    %7 = arith.maximumf %5, %6 : vector<32x8xf32>
    %c0_6 = arith.constant 0 : index
    %c0_7 = arith.constant 0 : index
    %8 = vector.load %arg4[%c0_6, %c0_7] : memref<16x32xbf16, #tpu.memory_space<vmem>>, vector<16x32xbf16>
    %9 = arith.truncf %7 : vector<32x8xf32> to vector<32x8xbf16>
    %cst_8 = arith.constant dense<0.000000e+00> : vector<16x8xf32>
    %10 = tpu.matmul %8, %9, %cst_8 {dimension_numbers = #tpu.dot_dimension_numbers<[1], [0], [0], [1], [0, 0, 1, 1], [], []>} : vector<16x32xbf16>, vector<32x8xbf16>, vector<16x8xf32> -> vector<16x8xf32>
    %c0_9 = arith.constant 0 : index
    %c0_10 = arith.constant 0 : index
    %11 = vector.load %arg5[%c0_9, %c0_10] : memref<16x1xf32, #tpu.memory_space<vmem>>, vector<16x1xf32>
    %12 = vector.broadcast %11 : vector<16x1xf32> to vector<16x8xf32>
    %13 = arith.addf %10, %12 : vector<16x8xf32>
    %cst_11 = arith.constant 0.000000e+00 : f32
    %14 = vector.broadcast %cst_11 : f32 to vector<16x8xf32>
    %15 = arith.maximumf %13, %14 : vector<16x8xf32>
    %c0_12 = arith.constant 0 : index
    %c0_13 = arith.constant 0 : index
    %16 = vector.load %arg6[%c0_12, %c0_13] : memref<16x1xf32, #tpu.memory_space<vmem>>, vector<16x1xf32>
    %17 = vector.broadcast %16 : vector<16x1xf32> to vector<16x8xf32>
    %18 = arith.mulf %17, %15 : vector<16x8xf32>
    %cst_14 = arith.constant dense<0.000000e+00> : vector<8xf32>
    %19 = vector.multi_reduction <add>, %18, %cst_14 [0] : vector<16x8xf32> to vector<8xf32>
    %20 = vector.shape_cast %19 : vector<8xf32> to vector<1x8xf32>
    %c0_15 = arith.constant 0 : index
    %c0_16 = arith.constant 0 : index
    %21 = memref.load %arg7[%c0_15, %c0_16] : memref<1x1xf32, #tpu.memory_space<smem>>
    %22 = vector.broadcast %21 : f32 to vector<1x8xf32>
    %23 = arith.addf %20, %22 : vector<1x8xf32>
    %c0_17 = arith.constant 0 : index
    %c0_18 = arith.constant 0 : index
    %24 = vector.load %arg8[%c0_17, %c0_18] : memref<1x8xf32, #tpu.memory_space<vmem>>, vector<1x8xf32>
    tpu.vector_store %arg8[%c0_17, %c0_18], %23 {strides = array<i32>} : memref<1x8xf32, #tpu.memory_space<vmem>>, vector<1x8xf32>,
    return
  }
  func.func @transform_0(%arg0: i32) -> (i32, i32) {
    %c0_i32 = arith.constant 0 : i32
    %c0_i32_0 = arith.constant 0 : i32
    return %arg0, %c0_i32 : i32, i32
  }
  func.func @transform_1(%arg0: i32) -> (i32, i32) {
    %c0_i32 = arith.constant 0 : i32
    %c0_i32_0 = arith.constant 0 : i32
    %c0_i32_1 = arith.constant 0 : i32
    return %c0_i32, %c0_i32_0 : i32, i32
  }
  func.func @transform_2(%arg0: i32) -> (i32, i32) {
    %c0_i32 = arith.constant 0 : i32
    %c0_i32_0 = arith.constant 0 : i32
    %c0_i32_1 = arith.constant 0 : i32
    return %c0_i32, %c0_i32_0 : i32, i32
  }
  func.func @transform_3(%arg0: i32) -> (i32, i32) {
    %c0_i32 = arith.constant 0 : i32
    %c0_i32_0 = arith.constant 0 : i32
    %c0_i32_1 = arith.constant 0 : i32
    return %c0_i32, %c0_i32_0 : i32, i32
  }
  func.func @transform_4(%arg0: i32) -> (i32, i32) {
    %c0_i32 = arith.constant 0 : i32
    %c0_i32_0 = arith.constant 0 : i32
    %c0_i32_1 = arith.constant 0 : i32
    return %c0_i32, %c0_i32_0 : i32, i32
  }
  func.func @transform_5(%arg0: i32) -> (i32, i32) {
    %c0_i32 = arith.constant 0 : i32
    %c0_i32_0 = arith.constant 0 : i32
    %c0_i32_1 = arith.constant 0 : i32
    return %c0_i32, %c0_i32_0 : i32, i32
  }
  func.func @transform_6(%arg0: i32) -> (i32, i32) {
    %c0_i32 = arith.constant 0 : i32
    %c0_i32_0 = arith.constant 0 : i32
    %c0_i32_1 = arith.constant 0 : i32
    return %c0_i32, %c0_i32_0 : i32, i32
  }
  func.func @transform_7(%arg0: i32) -> (i32, i32) {
    %c0_i32 = arith.constant 0 : i32
    %c0_i32_0 = arith.constant 0 : i32
    return %c0_i32, %arg0 : i32, i32
  }
}

</mosaic_0001>

<llo_original>
// kernel: tpu_custom_call.1
$region0: #{tpu_custom_call.1}
  #allocation0 [shape = 'u32[]', space=smem, size = 0x4, offset = 0x4, fixed_abs, tag = 'smem constant byte address 0x4 - core index']
  #allocation1 [shape = 'u32[144,128]{1,0:T(1,128)}', space=vmem, size = 0x12000, scoped, tag = 'internal scratch']
  #allocation2 [shape = 'f32[1,1]{1,0:T(1,128)S(6)}', space=smem, size = 0x200, scoped, tag = 'scoped memory for tpu_custom_call.1']
  %s0 = inlined_call_operand.vmem [shape: f32[8,3], index: 0, kind: input, shape index: {}]
  %s1 = inlined_call_operand.vmem [shape: f32[32,3], index: 1, kind: input, shape index: {}]
  %s2 = inlined_call_operand.vmem [shape: f32[32,1], index: 2, kind: input, shape index: {}]
  %s3 = inlined_call_operand.vmem [shape: bf16[16,32], index: 3, kind: input, shape index: {}]
  %s4 = inlined_call_operand.vmem [shape: f32[16,1], index: 4, kind: input, shape index: {}]
  %s5 = inlined_call_operand.vmem [shape: f32[16,1], index: 5, kind: input, shape index: {}]
  %s6 = inlined_call_operand.<no memory space> [shape: f32[1,1], index: 6, kind: input, shape index: {}]
  %s7 = inlined_call_operand.hbm [shape: f32[1,8], index: 7, kind: output, shape index: {}]
  %s8 = sld [smem:[#allocation0]]
  $region38: #{tpu_custom_call.1} parent=0
    _
  %s10 = ssub.s32 1, %s8
  %s11 = scalar_select 0, %s10, %s8
  %12 = sst [smem:[#allocation2]] %s6
  $region1: #{tpu_custom_call.1} parent=0
    #allocation3 [shape = 'u8[512]{0}', space=vmem, size = 0x400, scoped, tag = 'output window, operand 0, single buffered']
    #allocation4 [shape = 's32[1]{0}', space=sflag, size = 0x4, scoped, tag = 'scoped memory for tpu_custom_call.1']
    %13 = vsyncpa [#allocation4], 0
    // Predicated region
    $region2: #{tpu_custom_call.1} parent=1 // pred_check
      _
    $region3: #{tpu_custom_call.1} parent=1 // pred_check_branch
      %15 = sbr.rel (0) target = $region5
    $region4: #{tpu_custom_call.1} parent=1 // pred_region
      _
    $region5: #{tpu_custom_call.1} parent=1 // pred_fallthru
      _
    // Predicated region
    $region6: #{tpu_custom_call.1} parent=1 // pred_check
      _
    $region7: #{tpu_custom_call.1} parent=1 // pred_check_branch
      %17 = sbr.rel (0) target = $region9
    $region8: #{tpu_custom_call.1} parent=1 // pred_region
      _
    $region9: #{tpu_custom_call.1} parent=1 // pred_fallthru
      _
    // Predicated region
    $region10: #{tpu_custom_call.1} parent=1 // pred_check
      _
    $region11: #{tpu_custom_call.1} parent=1 // pred_check_branch
      %19 = sbr.rel (0) target = $region13
    $region12: #{tpu_custom_call.1} parent=1 // pred_region
      _
    $region13: #{tpu_custom_call.1} parent=1 // pred_fallthru
      _
    // Predicated region
    $region14: #{tpu_custom_call.1} parent=1 // pred_check
      _
    $region15: #{tpu_custom_call.1} parent=1 // pred_check_branch
      %21 = sbr.rel (0) target = $region17
    $region16: #{tpu_custom_call.1} parent=1 // pred_region
      _
    $region17: #{tpu_custom_call.1} parent=1 // pred_fallthru
      _
    // Predicated region
    $region18: #{tpu_custom_call.1} parent=1 // pred_check
      _
    $region19: #{tpu_custom_call.1} parent=1 // pred_check_branch
      %23 = sbr.rel (0) target = $region21
    $region20: #{tpu_custom_call.1} parent=1 // pred_region
      _
    $region21: #{tpu_custom_call.1} parent=1 // pred_fallthru
      _
    // Predicated region
    $region22: #{tpu_custom_call.1} parent=1 // pred_check
      _
    $region23: #{tpu_custom_call.1} parent=1 // pred_check_branch
      %25 = sbr.rel (0) target = $region25
    $region24: #{tpu_custom_call.1} parent=1 // pred_region
      _
    $region25: #{tpu_custom_call.1} parent=1 // pred_fallthru
      _
    // Predicated region
    $region26: #{tpu_custom_call.1} parent=1 // pred_check
      _
    $region27: #{tpu_custom_call.1} parent=1 // pred_check_branch
      %27 = sbr.rel (0) target = $region29
    $region28: #{tpu_custom_call.1} parent=1 // pred_region
      _
    $region29: #{tpu_custom_call.1} parent=1 // pred_fallthru
      _
    %v29 = vld [vmem:[%s0] sm:$0xff]
    %v30 = vld [vmem:[%s1] sm:$0xff]
    %v31 = vld [vmem:[%s1 + $0x8] sm:$0xff]
    %v32 = vld [vmem:[%s1 + $0x10] sm:$0xff]
    %v33 = vld [vmem:[%s1 + $0x18] sm:$0xff]
    %v34 = vld [vmem:[%s2] sm:$0xff]
    %v35 = vld [vmem:[%s2 + $0x8] sm:$0xff]
    %v36 = vld [vmem:[%s2 + $0x10] sm:$0xff]
    %v37 = vld [vmem:[%s2 + $0x18] sm:$0xff]
    %39 = vset.pattern.permute.xlu0 0
    %40 = vperm.xlu0 %39, %v34
    %v41 = vpop.permute.xlu0 %40
    %44 = vset.pattern.permute.xlu0 0
    %45 = vperm.xlu0 %44, %v35
    %v46 = vpop.permute.xlu0 %45
    %49 = vset.pattern.permute.xlu0 0
    %50 = vperm.xlu0 %49, %v36
    %v51 = vpop.permute.xlu0 %50
    %54 = vset.pattern.permute.xlu0 0
    %55 = vperm.xlu0 %54, %v37
    %v56 = vpop.permute.xlu0 %55
    %vm58 = vcmask 23552
    %v60 = vsel %vm58, %v30, 0
    %v63 = vsel %vm58, %v31, 0
    %v66 = vsel %vm58, %v32, 0
    %v69 = vsel %vm58, %v33, 0
    %v72 = vsel %vm58, %v29, 0
    %74 = vmatprep.subr.mxu0 0.0
    %75 = vmatpush1.xpose.msra.mxu0 %v72
    %76 = vmatprep.subr.mxu0 0.0
    %77 = vmatpush1.xpose.msra.mxu0 0.0
    %78 = vmatprep.subr.mxu0 0.0
    %79 = vmatpush1.xpose.msra.mxu0 0.0
    %80 = vmatprep.subr.mxu0 0.0
    %81 = vmatpush1.xpose.msra.mxu0 0.0
    %82 = vmatprep.subr.mxu0 0.0
    %83 = vmatpush1.xpose.msra.mxu0 0.0
    %84 = vmatprep.subr.mxu0 0.0
    %85 = vmatpush1.xpose.msra.mxu0 0.0
    %86 = vmatprep.subr.mxu0 0.0
    %87 = vmatpush1.xpose.msra.mxu0 0.0
    %88 = vmatprep.subr.mxu0 0.0
    %89 = vmatpush1.xpose.msra.mxu0 0.0
    %90 = vmatprep.subr.mxu0 0.0
    %91 = vmatpush1.xpose.msra.mxu0 0.0
    %92 = vmatprep.subr.mxu0 0.0
    %93 = vmatpush1.xpose.msra.mxu0 0.0
    %94 = vmatprep.subr.mxu0 0.0
    %95 = vmatpush1.xpose.msra.mxu0 0.0
    %96 = vmatprep.subr.mxu0 0.0
    %97 = vmatpush1.xpose.msra.mxu0 0.0
    %98 = vmatprep.subr.mxu0 0.0
    %99 = vmatpush1.xpose.msra.mxu0 0.0
    %100 = vmatprep.subr.mxu0 0.0
    %101 = vmatpush1.xpose.msra.mxu0 0.0
    %102 = vmatprep.subr.mxu0 0.0
    %103 = vmatpush1.xpose.msra.mxu0 0.0
    %104 = vmatprep.subr.mxu0 0.0
    %105 = vmatpush1.xpose.msra.mxu0 0.0
    %106 = vmatprep.subr.mxu0 0.0
    %107 = vmatpush1.xpose.msra.mxu0 0.0
    %108 = vmatprep.subr.mxu0 0.0
    %109 = vmatpush1.xpose.msra.mxu0 0.0
    %110 = vmatprep.subr.mxu0 0.0
    %111 = vmatpush1.xpose.msra.mxu0 0.0
    %112 = vmatprep.subr.mxu0 0.0
    %113 = vmatpush1.xpose.msra.mxu0 0.0
    %114 = vmatprep.subr.mxu0 0.0
    %115 = vmatpush1.xpose.msra.mxu0 0.0
    %116 = vmatprep.subr.mxu0 0.0
    %117 = vmatpush1.xpose.msra.mxu0 0.0
    %118 = vmatprep.subr.mxu0 0.0
    %119 = vmatpush1.xpose.msra.mxu0 0.0
    %120 = vmatprep.subr.mxu0 0.0
    %121 = vmatpush1.xpose.msra.mxu0 0.0
    %122 = vmatprep.subr.mxu0 0.0
    %123 = vmatpush1.xpose.msra.mxu0 0.0
    %124 = vmatprep.subr.mxu0 0.0
    %125 = vmatpush1.xpose.msra.mxu0 0.0
    %126 = vmatprep.subr.mxu0 0.0
    %127 = vmatpush1.xpose.msra.mxu0 0.0
    %128 = vmatprep.subr.mxu0 0.0
    %129 = vmatpush1.xpose.msra.mxu0 0.0
    %130 = vmatprep.subr.mxu0 0.0
    %131 = vmatpush1.xpose.msra.mxu0 0.0
    %132 = vmatprep.subr.mxu0 0.0
    %133 = vmatpush1.xpose.msra.mxu0 0.0
    %134 = vmatprep.subr.mxu0 0.0
    %135 = vmatpush1.xpose.msra.mxu0 0.0
    %136 = vmatprep.subr.mxu0 0.0
    %137 = vmatpush1.xpose.msra.mxu0 0.0
    %138 = vmatprep.mubr.f32.mxu0 0.0
    %139 = vmatmul.mubr.f32.gmra.mrb[0].mxu0 %v60
    %v140 = vpop.f32.mrb[0].mxu0
    %v141 = vadd.f32 %v41, %v140
    %v142 = vpop.f32.mrb[0].mxu0
    %143 = vmatprep.mubr.f32.mxu0 0.0
    %144 = vmatmul.mubr.f32.gmra.mrb[0].mxu0 %v63
    %v145 = vpop.f32.mrb[0].mxu0
    %v146 = vadd.f32 %v46, %v145
    %v147 = vpop.f32.mrb[0].mxu0
    %148 = vmatprep.mubr.f32.mxu0 0.0
    %149 = vmatmul.mubr.f32.gmra.mrb[0].mxu0 %v66
    %v150 = vpop.f32.mrb[0].mxu0
    %v151 = vadd.f32 %v51, %v150
    %v152 = vpop.f32.mrb[0].mxu0
    %153 = vmatprep.mubr.f32.mxu0 0.0
    %154 = vmatmul.mubr.f32.gmra.mrb[0].mxu0 %v69
    %v155 = vpop.f32.mrb[0].mxu0
    %v156 = vadd.f32 %v56, %v155
    %v157 = vpop.f32.mrb[0].mxu0
    %158 = vdwg.mxu0
    %v159 = vmax.f32 %v141, 0.0
    %v160 = vmax.f32 %v146, 0.0
    %v161 = vmax.f32 %v151, 0.0
    %v162 = vmax.f32 %v156, 0.0
    %v163 = vld [vmem:[%s3] sm:$0xf]
    %v164 = vld [vmem:[%s3 + $0x4] sm:$0xf]
    %v165 = vpack.c.bf16 %v160, %v159
    %v166 = vpack.c.bf16 %v162, %v161
    %v167 = vld [vmem:[%s4] sm:$0xff]
    %v168 = vld [vmem:[%s4 + $0x8] sm:$0xff]
    %170 = vset.pattern.permute.xlu0 0
    %171 = vperm.xlu0 %170, %v167
    %v172 = vpop.permute.xlu0 %171
    %175 = vset.pattern.permute.xlu0 0
    %176 = vperm.xlu0 %175, %v168
    %v177 = vpop.permute.xlu0 %176
    %v181 = vunpack.c.l.b16 %v163
    %v182 = vunpack.c.l.b16 %v164
    %v183 = vpack.c.b16 %v182, %v181
    %vm184 = vcmask 261120
    %v186 = vsel %vm184, %v183, 0
    %188 = vmatprep.subr.bf16.mxu0 0
    %189 = vmatpush1.bf16.msra.mxu0 %v165
    %190 = vmatprep.subr.bf16.mxu0 0
    %191 = vmatpush1.bf16.msra.mxu0 %v166
    %192 = vmatprep.subr.bf16.mxu0 0
    %193 = vmatpush1.bf16.msra.mxu0 0
    %194 = vmatprep.subr.bf16.mxu0 0
    %195 = vmatpush1.bf16.msra.mxu0 0
    %196 = vmatprep.subr.bf16.mxu0 0
    %197 = vmatpush1.bf16.msra.mxu0 0
    %198 = vmatprep.subr.bf16.mxu0 0
    %199 = vmatpush1.bf16.msra.mxu0 0
    %200 = vmatprep.subr.bf16.mxu0 0
    %201 = vmatpush1.bf16.msra.mxu0 0
    %202 = vmatprep.subr.bf16.mxu0 0
    %203 = vmatpush1.bf16.msra.mxu0 0
    %204 = vmatprep.subr.bf16.mxu0 0
    %205 = vmatpush1.bf16.msra.mxu0 0
    %206 = vmatprep.subr.bf16.mxu0 0
    %207 = vmatpush1.bf16.msra.mxu0 0
    %208 = vmatprep.subr.bf16.mxu0 0
    %209 = vmatpush1.bf16.msra.mxu0 0
    %210 = vmatprep.subr.bf16.mxu0 0
    %211 = vmatpush1.bf16.msra.mxu0 0
    %212 = vmatprep.subr.bf16.mxu0 0
    %213 = vmatpush1.bf16.msra.mxu0 0
    %214 = vmatprep.subr.bf16.mxu0 0
    %215 = vmatpush1.bf16.msra.mxu0 0
    %216 = vmatprep.subr.bf16.mxu0 0
    %217 = vmatpush1.bf16.msra.mxu0 0
    %218 = vmatprep.subr.bf16.mxu0 0
    %219 = vmatpush1.bf16.msra.mxu0 0
    %220 = vmatprep.mubr.bf16.mxu0 0
    %221 = vmatmul.mubr.bf16.gmra.mrb[0].mxu0 %v186
    %v222 = vpop.f32.mrb[0].mxu0
    %v223 = vadd.f32 %v172, %v222
    %v224 = vpop.f32.mrb[0].mxu0
    %v225 = vpop.f32.mrb[0].mxu0
    %v226 = vadd.f32 %v177, %v225
    %v227 = vpop.f32.mrb[0].mxu0
    %228 = vdwg.mxu0
    %v229 = vmax.f32 %v223, 0.0
    %v230 = vmax.f32 %v226, 0.0
    %v231 = vld [vmem:[%s5] sm:$0xff]
    %v232 = vld [vmem:[%s5 + $0x8] sm:$0xff]
    %234 = vset.pattern.permute.xlu0 0
    %235 = vperm.xlu0 %234, %v231
    %v236 = vpop.permute.xlu0 %235
    %239 = vset.pattern.permute.xlu0 0
    %240 = vperm.xlu0 %239, %v232
    %v241 = vpop.permute.xlu0 %240
    %v243 = vmul.f32 %v236, %v229
    %v244 = vmul.f32 %v241, %v230
    %vm245 = vcmask 64512
    %v246 = vsel %vm245, %v243, 0.0
    %v247 = vsel %vm245, %v244, 0.0
    %v248 = vadd.f32 %v246, %v247
    %v249 = vrot.slane %v248, 4
    %v250 = vadd.f32 %v248, %v249
    %v251 = vrot.slane %v250, 2
    %v252 = vadd.f32 %v250, %v251
    %v253 = vrot.slane %v252, 1
    %v254 = vadd.f32 %v252, %v253
    %s255 = sld [smem:[#allocation2]]
    %v256 = vstv %s255
    %v257 = vadd.f32 %v254, %v256
    %vm258 = vcmask 57344
    %259 = vst.msk [vmem:[#allocation3] sm:$0x1] %vm258, %v257
    // Predicated region
    $region30: #{tpu_custom_call.1} parent=1 // pred_check
      _
    $region31: #{tpu_custom_call.1} parent=1 // pred_check_branch
      %261 = sbr.rel (0) target = $region33
    $region32: #{tpu_custom_call.1} parent=1 // pred_region
      %s263 = ssub.s32 16, 16
      %264 = vsyncadd [#allocation4], %s263
      %s266 = sshll.u32 [#allocation3], 4
      %s267 = int_to_ptr.vmem [resolvable:$true] %s266
      %269 = dma.vmem_to_hbm [thread:$0]  %s267, 16, %s7, [#allocation4]
    $region33: #{tpu_custom_call.1} parent=1 // pred_fallthru
      _
    // Predicated region
    $region34: #{tpu_custom_call.1} parent=1 // pred_check
      _
    $region35: #{tpu_custom_call.1} parent=1 // pred_check_branch
      %271 = sbr.rel (0) target = $region37
    $region36: #{tpu_custom_call.1} parent=1 // pred_region
      %272 = dma.done [#allocation4], 16
    $region37: #{tpu_custom_call.1} parent=1 // pred_fallthru
      _
    %273 = vsyncpa [#allocation4], 1

</llo_original>
